<compile_context>
chip_gen: v7x
topology: tpu7x:2x2x1
jax: 0.10.0
libtpu: 0.0.40
codegen_flags: <defaults>
</compile_context>

<pallas_src>
import jax
import jax.numpy as jnp
from jax import lax
from jax.experimental import pallas as pl
from jax.experimental.pallas import tpu as pltpu


def _round_up(x, m):
    return (x + m - 1) // m * m


def _tile_bytes(rows, cols, itemsize):
    """VMEM footprint of a (rows, cols) tile, including (8,128) layout padding."""
    return _round_up(max(rows, 1), 8) * _round_up(max(cols, 1), 128) * itemsize


def critic_kernel(x_ref, w1_ref, b1_ref, w2_ref, b2_ref, w3t_ref, b3_ref, out_ref):
    """Fused 3-layer MLP for one batch tile.

    x_ref  : (BT, F)        w1_ref : (F, H)   b1_ref: (1, H)
                            w2_ref : (H, H)   b2_ref: (1, H)
                            w3t_ref: (1, H)   b3_ref: (1, 1)   (value head, transposed)
    out_ref: (1, BT) -- batch on the lane axis (lane-dense, unmasked stores)
    """
    x = x_ref[...]

    # Layer 1: Linear + ReLU (f32 accumulation on the MXU, bias/ReLU in f32 on VPU).
    h1 = jnp.dot(x, w1_ref[...], preferred_element_type=jnp.float32) + b1_ref[...]
    h1 = jnp.maximum(h1, 0.0)

    # Layer 2: Linear + ReLU.
    h2 = jnp.dot(h1.astype(w2_ref.dtype), w2_ref[...],
                 preferred_element_type=jnp.float32) + b2_ref[...]
    h2 = jnp.maximum(h2, 0.0)

    # Layer 3 (value head): contract w3^T's last dim with h2's last dim (trans_b on
    # the MXU) -> (1, BT) with batch on lanes.  No explicit (BT, H) XLU transpose.
    v_t = lax.dot_general(
        w3t_ref[...], h2.astype(w3t_ref.dtype),
        dimension_numbers=(((1,), (1,)), ((), ())),
        preferred_element_type=jnp.float32,
    ) + b3_ref[...]
    out_ref[...] = v_t.astype(out_ref.dtype)


def critic_forward(x, params, *, batch_tile=None, compute_dtype=None, interpret=False):
    """Run the Critic forward pass with a single fused Pallas kernel."""
    w1, b1, w2, b2, w3, b3 = params
    B, num_inputs = x.shape
    hidden = w1.shape[1]
    out_dtype = jnp.promote_types(x.dtype, jnp.float32)

    # Optional low-precision streaming (halves the dominant x HBM stream, full-rate
    # bf16 MXU on v6e/v7x).  Off by default: changes numerics vs the f32 reference.
    if compute_dtype is not None:
        x = x.astype(compute_dtype)
        w1 = w1.astype(compute_dtype)
        w2 = w2.astype(compute_dtype)
        w3 = w3.astype(compute_dtype)

    # --- Pad hidden dim to a full lane width (weights only, tiny, exact). ---
    hp = _round_up(hidden, 128)
    if hp != hidden:
        pad_h = hp - hidden
        w1 = jnp.pad(w1, ((0, 0), (0, pad_h)))
        b1 = jnp.pad(b1, ((0, 0), (0, pad_h)))
        w2 = jnp.pad(w2, ((0, pad_h), (0, pad_h)))
        b2 = jnp.pad(b2, ((0, 0), (0, pad_h)))
        w3 = jnp.pad(w3, ((0, pad_h), (0, 0)))
    w3_t = w3.T  # (1, hp): value-head weights, transposed for the lane-dense head.

    # --- Batch tiling: big tiles, megacore-friendly grid, NO full jnp.pad of x. ---
    # Block shapes are legal if each dim is (8,128)-aligned or equals the full dim;
    # a ragged last block (partial reads/writes) is handled by Pallas masking.
    MAX_TILE = 2048  # default; sweep 2048-8192 for very large B if VMEM allows.
    if batch_tile is None:
        if B <= 256:
            batch_tile = B                       # single full block, no alignment needed
        else:
            batch_tile = min(MAX_TILE, _round_up(pl.cdiv(B, 2), 128))  # grid >= 2
    else:
        batch_tile = _round_up(batch_tile, 128)
        if batch_tile >= B:
            batch_tile = B                       # collapse to one full block
    grid = (pl.cdiv(B, batch_tile),)

    # Weights/biases are small and index-invariant: full tensor every step.
    full2d = lambda shape: pl.BlockSpec(shape, lambda i: (0, 0))

    in_itemsize = x.dtype.itemsize
    w_itemsize = w1.dtype.itemsize
    out_itemsize = jnp.dtype(out_dtype).itemsize

    # VMEM budget (includes the 8x lane-padding of the narrow x tile + double buffers
    # + f32 activation temps); raise the scoped limit if needed, stay v7x-safe.
    vmem_est = (
        2 * _tile_bytes(batch_tile, num_inputs, in_itemsize)   # x double buffer
        + 2 * _tile_bytes(1, batch_tile, out_itemsize)         # out double buffer
        + _tile_bytes(num_inputs, hp, w_itemsize)              # w1
        + _tile_bytes(hp, hp, w_itemsize)                      # w2
        + 3 * _tile_bytes(1, hp, 4)                            # b1, b2, w3_t
        + _tile_bytes(1, 1, 4)                                 # b3
        + 3 * _tile_bytes(batch_tile, hp, 4)                   # h1/h2/head temps (f32)
    )
    vmem_limit = int(min(max(2 * vmem_est, 32 << 20), 56 << 20))

    flops = 2 * B * (num_inputs * hidden + hidden * hidden + hidden)
    bytes_accessed = (
        B * num_inputs * in_itemsize
        + sum(int(p.size) * p.dtype.itemsize for p in (w1, b1, w2, b2, w3_t, b3))
        + B * out_itemsize
    )

    out = pl.pallas_call(
        critic_kernel,
        out_shape=jax.ShapeDtypeStruct((1, B), out_dtype),
        grid_spec=pltpu.PrefetchScalarGridSpec(
            num_scalar_prefetch=0,
            grid=grid,
            in_specs=[
                # x tile; if the per-step x DMA is still exposed at large tiles,
                # add pipeline_mode=pl.Buffered(3) here (x only, not the weights).
                pl.BlockSpec((batch_tile, num_inputs), lambda i: (i, 0)),
                full2d((num_inputs, hp)),  # w1
                full2d((1, hp)),           # b1
                full2d((hp, hp)),          # w2
                full2d((1, hp)),           # b2
                full2d((1, hp)),           # w3 (transposed)
                full2d((1, 1)),            # b3
            ],
            # Lane-dense output slab: batch lives on the lane axis.
            out_specs=pl.BlockSpec((1, batch_tile), lambda i: (0, i)),
        ),
        compiler_params=pltpu.CompilerParams(
            dimension_semantics=("parallel",),
            vmem_limit_bytes=vmem_limit,
        ),
        cost_estimate=pl.CostEstimate(
            flops=flops, transcendentals=0, bytes_accessed=bytes_accessed),
        interpret=interpret,
    )(x, w1, b1, w2, b2, w3_t, b3)

    # (1, B) -> (B, 1): lane j of the output row is the value of batch element j.
    return out.reshape(B, 1)


def init_critic_params(key, num_inputs, hidden_size, dtype=jnp.float32):
    """Deterministic PyTorch-style (uniform +-1/sqrt(fan_in)) initialization."""
    keys = jax.random.split(key, 6)

    def linear_init(kw, kb, fan_in, fan_out):
        bound = 1.0 / (fan_in ** 0.5)
        w = jax.random.uniform(kw, (fan_in, fan_out), dtype, -bound, bound)
        b = jax.random.uniform(kb, (1, fan_out), dtype, -bound, bound)
        return w, b

    w1, b1 = linear_init(keys[0], keys[1], num_inputs, hidden_size)
    w2, b2 = linear_init(keys[2], keys[3], hidden_size, hidden_size)
    w3, b3 = linear_init(keys[4], keys[5], hidden_size, 1)
    return (w1, b1, w2, b2, w3, b3)


def critic_reference(x, params):
    """Pure-JAX reference for correctness checking."""
    w1, b1, w2, b2, w3, b3 = params
    h1 = jnp.maximum(x @ w1 + b1, 0.0)
    h2 = jnp.maximum(h1 @ w2 + b2, 0.0)
    return h2 @ w3 + b3


if __name__ == "__main__":
    key = jax.random.PRNGKey(0)
    k_params, k_x, k_x2 = jax.random.split(key, 3)

    batch = 16
    num_inputs = 16
    hidden_size = 32

    params = init_critic_params(k_params, num_inputs, hidden_size)
    x = jax.random.normal(k_x, (batch, num_inputs), dtype=jnp.float32)

    # Small batch: single full-array block, grid length 1, no padding of x at all.
    value = jax.block_until_ready(critic_forward(x, params))
    ref = critic_reference(x, params)
    assert value.shape == (batch, 1), value.shape
    assert jnp.allclose(value, ref, atol=1e-5, rtol=1e-5), (
        f"max abs err {jnp.max(jnp.abs(value - ref))}"
    )

    # Multi-tile path with a ragged last block (grid length 3, no jnp.pad of x)
    # to exercise the tiled, lane-dense output writeback.
    batch2 = 300
    x2 = jax.random.normal(k_x2, (batch2, num_inputs), dtype=jnp.float32)
    value2 = jax.block_until_ready(critic_forward(x2, params, batch_tile=128))
    ref2 = critic_reference(x2, params)
    assert value2.shape == (batch2, 1), value2.shape
    assert jnp.allclose(value2, ref2, atol=1e-5, rtol=1e-5), (
        f"max abs err {jnp.max(jnp.abs(value2 - ref2))}"
    )

    # Default (auto) tiling on the same moderate batch: tile capped so the parallel
    # grid has length >= 2 (megacore-friendly on v7x).
    value3 = jax.block_until_ready(critic_forward(x2, params))
    assert jnp.allclose(value3, ref2, atol=1e-5, rtol=1e-5), (
        f"max abs err {jnp.max(jnp.abs(value3 - ref2))}"
    )

    print("KERNEL_OK")
</pallas_src>

<mosaic_0001>
module attributes {stable_mosaic.version = 11 : i64} {
  func.func @critic_kernel(%arg0: i32, %arg1: memref<16x16xf32, #tpu.memory_space<vmem>>, %arg2: memref<16x128xf32, #tpu.memory_space<vmem>>, %arg3: memref<1x128xf32, #tpu.memory_space<vmem>>, %arg4: memref<128x128xf32, #tpu.memory_space<vmem>>, %arg5: memref<1x128xf32, #tpu.memory_space<vmem>>, %arg6: memref<1x128xf32, #tpu.memory_space<vmem>>, %arg7: memref<1x1xf32, #tpu.memory_space<vmem>>, %arg8: memref<1x16xf32, #tpu.memory_space<vmem>>) attributes {dimension_semantics = [#tpu.dimension_semantics<parallel>], iteration_bounds = array<i64: 1>, scalar_prefetch = 0 : i64, scratch_operands = 0 : i64, tpu.core_type = #tpu.core_type<tc>, window_params = [{transform_indices = @transform_0, window_bounds = array<i64: 16, 16>}, {pipeline_mode = #tpu.pipeline_mode<synchronous>, transform_indices = @transform_1, window_bounds = array<i64: 16, 128>}, {pipeline_mode = #tpu.pipeline_mode<synchronous>, transform_indices = @transform_2, window_bounds = array<i64: 1, 128>}, {pipeline_mode = #tpu.pipeline_mode<synchronous>, transform_indices = @transform_3, window_bounds = array<i64: 128, 128>}, {pipeline_mode = #tpu.pipeline_mode<synchronous>, transform_indices = @transform_4, window_bounds = array<i64: 1, 128>}, {pipeline_mode = #tpu.pipeline_mode<synchronous>, transform_indices = @transform_5, window_bounds = array<i64: 1, 128>}, {pipeline_mode = #tpu.pipeline_mode<synchronous>, transform_indices = @transform_6, window_bounds = array<i64: 1, 1>}, {transform_indices = @transform_7, window_bounds = array<i64: 1, 16>}]} {
    %c0 = arith.constant 0 : index
    %c0_0 = arith.constant 0 : index
    %0 = vector.load %arg1[%c0, %c0_0] : memref<16x16xf32, #tpu.memory_space<vmem>>, vector<16x16xf32>
    %c0_1 = arith.constant 0 : index
    %c0_2 = arith.constant 0 : index
    %1 = vector.load %arg2[%c0_1, %c0_2] : memref<16x128xf32, #tpu.memory_space<vmem>>, vector<16x128xf32>
    %cst = arith.constant dense<0.000000e+00> : vector<16x128xf32>
    %2 = tpu.matmul %0, %1, %cst {dimension_numbers = #tpu.dot_dimension_numbers<[1], [0], [0], [1], [0, 0, 1, 1], [], []>} : vector<16x16xf32>, vector<16x128xf32>, vector<16x128xf32> -> vector<16x128xf32>
    %c0_3 = arith.constant 0 : index
    %c0_4 = arith.constant 0 : index
    %3 = vector.load %arg3[%c0_3, %c0_4] : memref<1x128xf32, #tpu.memory_space<vmem>>, vector<1x128xf32>
    %4 = vector.broadcast %3 : vector<1x128xf32> to vector<16x128xf32>
    %5 = arith.addf %2, %4 : vector<16x128xf32>
    %cst_5 = arith.constant 0.000000e+00 : f32
    %6 = vector.broadcast %cst_5 : f32 to vector<16x128xf32>
    %7 = arith.maximumf %5, %6 : vector<16x128xf32>
    %c0_6 = arith.constant 0 : index
    %c0_7 = arith.constant 0 : index
    %8 = vector.load %arg4[%c0_6, %c0_7] : memref<128x128xf32, #tpu.memory_space<vmem>>, vector<128x128xf32>
    %cst_8 = arith.constant dense<0.000000e+00> : vector<16x128xf32>
    %9 = tpu.matmul %7, %8, %cst_8 {dimension_numbers = #tpu.dot_dimension_numbers<[1], [0], [0], [1], [0, 0, 1, 1], [], []>} : vector<16x128xf32>, vector<128x128xf32>, vector<16x128xf32> -> vector<16x128xf32>
    %c0_9 = arith.constant 0 : index
    %c0_10 = arith.constant 0 : index
    %10 = vector.load %arg5[%c0_9, %c0_10] : memref<1x128xf32, #tpu.memory_space<vmem>>, vector<1x128xf32>
    %11 = vector.broadcast %10 : vector<1x128xf32> to vector<16x128xf32>
    %12 = arith.addf %9, %11 : vector<16x128xf32>
    %cst_11 = arith.constant 0.000000e+00 : f32
    %13 = vector.broadcast %cst_11 : f32 to vector<16x128xf32>
    %14 = arith.maximumf %12, %13 : vector<16x128xf32>
    %c0_12 = arith.constant 0 : index
    %c0_13 = arith.constant 0 : index
    %15 = vector.load %arg6[%c0_12, %c0_13] : memref<1x128xf32, #tpu.memory_space<vmem>>, vector<1x128xf32>
    %cst_14 = arith.constant dense<0.000000e+00> : vector<1x16xf32>
    %16 = tpu.matmul %15, %14, %cst_14 {dimension_numbers = #tpu.dot_dimension_numbers<[1], [1], [0], [0], [0, 0, 1, 0], [], []>} : vector<1x128xf32>, vector<16x128xf32>, vector<1x16xf32> -> vector<1x16xf32>
    %c0_15 = arith.constant 0 : index
    %c0_16 = arith.constant 0 : index
    %17 = vector.load %arg7[%c0_15, %c0_16] : memref<1x1xf32, #tpu.memory_space<vmem>>, vector<1x1xf32>
    %18 = vector.broadcast %17 : vector<1x1xf32> to vector<1x16xf32>
    %19 = arith.addf %16, %18 : vector<1x16xf32>
    %c0_17 = arith.constant 0 : index
    %c0_18 = arith.constant 0 : index
    %20 = vector.load %arg8[%c0_17, %c0_18] : memref<1x16xf32, #tpu.memory_space<vmem>>, vector<1x16xf32>
    tpu.vector_store %arg8[%c0_17, %c0_18], %19 {strides = array<i32>} : memref<1x16xf32, #tpu.memory_space<vmem>>, vector<1x16xf32>,
    return
  }
  func.func @transform_0(%arg0: i32) -> (i32, i32) {
    %c0_i32 = arith.constant 0 : i32
    %c0_i32_0 = arith.constant 0 : i32
    return %arg0, %c0_i32 : i32, i32
  }
  func.func @transform_1(%arg0: i32) -> (i32, i32) {
    %c0_i32 = arith.constant 0 : i32
    %c0_i32_0 = arith.constant 0 : i32
    %c0_i32_1 = arith.constant 0 : i32
    return %c0_i32, %c0_i32_0 : i32, i32
  }
  func.func @transform_2(%arg0: i32) -> (i32, i32) {
    %c0_i32 = arith.constant 0 : i32
    %c0_i32_0 = arith.constant 0 : i32
    %c0_i32_1 = arith.constant 0 : i32
    return %c0_i32, %c0_i32_0 : i32, i32
  }
  func.func @transform_3(%arg0: i32) -> (i32, i32) {
    %c0_i32 = arith.constant 0 : i32
    %c0_i32_0 = arith.constant 0 : i32
    %c0_i32_1 = arith.constant 0 : i32
    return %c0_i32, %c0_i32_0 : i32, i32
  }
  func.func @transform_4(%arg0: i32) -> (i32, i32) {
    %c0_i32 = arith.constant 0 : i32
    %c0_i32_0 = arith.constant 0 : i32
    %c0_i32_1 = arith.constant 0 : i32
    return %c0_i32, %c0_i32_0 : i32, i32
  }
  func.func @transform_5(%arg0: i32) -> (i32, i32) {
    %c0_i32 = arith.constant 0 : i32
    %c0_i32_0 = arith.constant 0 : i32
    %c0_i32_1 = arith.constant 0 : i32
    return %c0_i32, %c0_i32_0 : i32, i32
  }
  func.func @transform_6(%arg0: i32) -> (i32, i32) {
    %c0_i32 = arith.constant 0 : i32
    %c0_i32_0 = arith.constant 0 : i32
    %c0_i32_1 = arith.constant 0 : i32
    return %c0_i32, %c0_i32_0 : i32, i32
  }
  func.func @transform_7(%arg0: i32) -> (i32, i32) {
    %c0_i32 = arith.constant 0 : i32
    %c0_i32_0 = arith.constant 0 : i32
    return %c0_i32, %arg0 : i32, i32
  }
}

</mosaic_0001>

<llo_original>
// kernel: tpu_custom_call.1
$region0: #{tpu_custom_call.1}
  #allocation0 [shape = 'u32[]', space=smem, size = 0x4, offset = 0x4, fixed_abs, tag = 'smem constant byte address 0x4 - core index']
  #allocation1 [shape = 'u32[144,128]{1,0:T(1,128)}', space=vmem, size = 0x12000, scoped, tag = 'internal scratch']
  #allocation2 [shape = 'f32[1,1]{1,0:T(1,128)S(1)}', space=vmem, size = 0x200, scoped, tag = 'scoped memory for tpu_custom_call.1']
  %s0 = inlined_call_operand.hbm [shape: f32[16,16], index: 0, kind: input, shape index: {}]
  %s1 = inlined_call_operand.hbm [shape: f32[16,128], index: 1, kind: input, shape index: {}]
  %s2 = inlined_call_operand.vmem [shape: f32[1,128], index: 2, kind: input, shape index: {}]
  %s3 = inlined_call_operand.hbm [shape: f32[128,128], index: 3, kind: input, shape index: {}]
  %s4 = inlined_call_operand.vmem [shape: f32[1,128], index: 4, kind: input, shape index: {}]
  %s5 = inlined_call_operand.vmem [shape: f32[1,128], index: 5, kind: input, shape index: {}]
  %s6 = inlined_call_operand.<no memory space> [shape: f32[1,1], index: 6, kind: input, shape index: {}]
  %s7 = inlined_call_operand.hbm [shape: f32[1,16], index: 7, kind: output, shape index: {}]
  %s8 = sld [smem:[#allocation0]]
  $region50: #{tpu_custom_call.1} parent=0
    _
  %s10 = ssub.s32 1, %s8
  %s11 = scalar_select 0, %s10, %s8
  %v12 = vstv %s6
  %13 = vst [vmem:[#allocation2] sm:$0x1] %v12
  $region1: #{tpu_custom_call.1} parent=0
    #allocation3 [shape = 'u8[8192]{0}', space=vmem, size = 0x2000, scoped, tag = 'input window, operand 0, single buffered']
    #allocation4 [shape = 's32[1]{0}', space=sflag, size = 0x4, scoped, tag = 'scoped memory for tpu_custom_call.1']
    #allocation5 [shape = 's32[1]{0}', space=sflag, size = 0x4, scoped, tag = 'scoped memory for tpu_custom_call.1']
    #allocation6 [shape = 'u8[8192]{0}', space=vmem, size = 0x2000, scoped, tag = 'input window, operand 1, single buffered']
    #allocation7 [shape = 's32[1]{0}', space=sflag, size = 0x4, scoped, tag = 'scoped memory for tpu_custom_call.1']
    #allocation8 [shape = 'u8[65536]{0}', space=vmem, size = 0x10000, scoped, tag = 'input window, operand 3, single buffered']
    #allocation9 [shape = 'u8[512]{0}', space=vmem, size = 0x400, scoped, tag = 'output window, operand 0, single buffered']
    %14 = vsyncpa [#allocation4], 0
    %15 = vsyncpa [#allocation7], 0
    %16 = vsyncpa [#allocation5], 0
    // Predicated region
    $region2: #{tpu_custom_call.1} parent=1 // pred_check
      _
    $region3: #{tpu_custom_call.1} parent=1 // pred_check_branch
      %18 = sbr.rel (0) target = $region5
    $region4: #{tpu_custom_call.1} parent=1 // pred_region
      %s20 = ssub.s32 256, 256
      %21 = vsyncadd [#allocation4], %s20
      %s22 = sshll.u32 [#allocation3], 4
      %s23 = int_to_ptr.vmem [resolvable:$true] %s22
      %28 = dma.hbm_to_vmem [thread:$0]  %s0, 256, %s23, [#allocation4], 128, 128, 8
    $region5: #{tpu_custom_call.1} parent=1 // pred_fallthru
      _
    // Predicated region
    $region6: #{tpu_custom_call.1} parent=1 // pred_check
      _
    $region7: #{tpu_custom_call.1} parent=1 // pred_check_branch
      %30 = sbr.rel (0) target = $region9
    $region8: #{tpu_custom_call.1} parent=1 // pred_region
      %s32 = ssub.s32 256, 256
      %33 = vsyncadd [#allocation7], %s32
      %s34 = sshll.u32 [#allocation6], 4
      %s35 = int_to_ptr.vmem [resolvable:$true] %s34
      %40 = dma.hbm_to_vmem [thread:$0]  %s1, 256, %s35, [#allocation7], 128, 128, 8
    $region9: #{tpu_custom_call.1} parent=1 // pred_fallthru
      _
    // Predicated region
    $region10: #{tpu_custom_call.1} parent=1 // pred_check
      _
    $region11: #{tpu_custom_call.1} parent=1 // pred_check_branch
      %42 = sbr.rel (0) target = $region13
    $region12: #{tpu_custom_call.1} parent=1 // pred_region
      _
    $region13: #{tpu_custom_call.1} parent=1 // pred_fallthru
      _
    // Predicated region
    $region14: #{tpu_custom_call.1} parent=1 // pred_check
      _
    $region15: #{tpu_custom_call.1} parent=1 // pred_check_branch
      %44 = sbr.rel (0) target = $region17
    $region16: #{tpu_custom_call.1} parent=1 // pred_region
      %s46 = ssub.s32 2048, 2048
      %47 = vsyncadd [#allocation7], %s46
      %s48 = sshll.u32 [#allocation8], 4
      %s49 = int_to_ptr.vmem [resolvable:$true] %s48
      %54 = dma.hbm_to_vmem [thread:$0]  %s3, 2048, %s49, [#allocation7], 128, 128, 8
    $region17: #{tpu_custom_call.1} parent=1 // pred_fallthru
      _
    // Predicated region
    $region18: #{tpu_custom_call.1} parent=1 // pred_check
      _
    $region19: #{tpu_custom_call.1} parent=1 // pred_check_branch
      %56 = sbr.rel (0) target = $region21
    $region20: #{tpu_custom_call.1} parent=1 // pred_region
      _
    $region21: #{tpu_custom_call.1} parent=1 // pred_fallthru
      _
    // Predicated region
    $region22: #{tpu_custom_call.1} parent=1 // pred_check
      _
    $region23: #{tpu_custom_call.1} parent=1 // pred_check_branch
      %58 = sbr.rel (0) target = $region25
    $region24: #{tpu_custom_call.1} parent=1 // pred_region
      _
    $region25: #{tpu_custom_call.1} parent=1 // pred_fallthru
      _
    // Predicated region
    $region26: #{tpu_custom_call.1} parent=1 // pred_check
      _
    $region27: #{tpu_custom_call.1} parent=1 // pred_check_branch
      %60 = sbr.rel (0) target = $region29
    $region28: #{tpu_custom_call.1} parent=1 // pred_region
      _
    $region29: #{tpu_custom_call.1} parent=1 // pred_fallthru
      _
    // Predicated region
    $region30: #{tpu_custom_call.1} parent=1 // pred_check
      _
    $region31: #{tpu_custom_call.1} parent=1 // pred_check_branch
      %62 = sbr.rel (0) target = $region33
    $region32: #{tpu_custom_call.1} parent=1 // pred_region
      %63 = dma.done [#allocation4], 256
    $region33: #{tpu_custom_call.1} parent=1 // pred_fallthru
      _
    // Predicated region
    $region34: #{tpu_custom_call.1} parent=1 // pred_check
      _
    $region35: #{tpu_custom_call.1} parent=1 // pred_check_branch
      %65 = sbr.rel (0) target = $region37
    $region36: #{tpu_custom_call.1} parent=1 // pred_region
      %66 = dma.done [#allocation7], 256
    $region37: #{tpu_custom_call.1} parent=1 // pred_fallthru
      _
    // Predicated region
    $region38: #{tpu_custom_call.1} parent=1 // pred_check
      _
    $region39: #{tpu_custom_call.1} parent=1 // pred_check_branch
      %68 = sbr.rel (0) target = $region41
    $region40: #{tpu_custom_call.1} parent=1 // pred_region
      %69 = dma.done [#allocation7], 2048
    $region41: #{tpu_custom_call.1} parent=1 // pred_fallthru
      _
    %v70 = vld [vmem:[#allocation3] sm:$0xff]
    %v71 = vld [vmem:[#allocation3 + $0x8] sm:$0xff]
    %v72 = vld [vmem:[#allocation6] sm:$0xff]
    %v73 = vld [vmem:[#allocation6 + $0x8] sm:$0xff]
    %v74 = vld [vmem:[%s2] sm:$0x1]
    %v76 = vlaneseq
    %v77 = vshrl.u32 %v76, 7
    %v78 = vsub.s32 0, %v77
    %v79 = vrot.slane %v74, %v78
    %vm81 = vcmask 130048
    %v83 = vsel %vm81, %v70, 0
    %v86 = vsel %vm81, %v71, 0
    %88 = vmatprep.subr.mxu0 0.0
    %89 = vmatpush1.msra.mxu0 %v72
    %90 = vmatprep.subr.mxu0 0.0
    %91 = vmatpush1.msra.mxu0 %v73
    %92 = vmatprep.subr.mxu0 0.0
    %93 = vmatpush1.msra.mxu0 0.0
    %94 = vmatprep.subr.mxu0 0.0
    %95 = vmatpush1.msra.mxu0 0.0
    %96 = vmatprep.subr.mxu0 0.0
    %97 = vmatpush1.msra.mxu0 0.0
    %98 = vmatprep.subr.mxu0 0.0
    %99 = vmatpush1.msra.mxu0 0.0
    %100 = vmatprep.subr.mxu0 0.0
    %101 = vmatpush1.msra.mxu0 0.0
    %102 = vmatprep.subr.mxu0 0.0
    %103 = vmatpush1.msra.mxu0 0.0
    %104 = vmatprep.subr.mxu0 0.0
    %105 = vmatpush1.msra.mxu0 0.0
    %106 = vmatprep.subr.mxu0 0.0
    %107 = vmatpush1.msra.mxu0 0.0
    %108 = vmatprep.subr.mxu0 0.0
    %109 = vmatpush1.msra.mxu0 0.0
    %110 = vmatprep.subr.mxu0 0.0
    %111 = vmatpush1.msra.mxu0 0.0
    %112 = vmatprep.subr.mxu0 0.0
    %113 = vmatpush1.msra.mxu0 0.0
    %114 = vmatprep.subr.mxu0 0.0
    %115 = vmatpush1.msra.mxu0 0.0
    %116 = vmatprep.subr.mxu0 0.0
    %117 = vmatpush1.msra.mxu0 0.0
    %118 = vmatprep.subr.mxu0 0.0
    %119 = vmatpush1.msra.mxu0 0.0
    %120 = vmatprep.subr.mxu0 0.0
    %121 = vmatpush1.msra.mxu0 0.0
    %122 = vmatprep.subr.mxu0 0.0
    %123 = vmatpush1.msra.mxu0 0.0
    %124 = vmatprep.subr.mxu0 0.0
    %125 = vmatpush1.msra.mxu0 0.0
    %126 = vmatprep.subr.mxu0 0.0
    %127 = vmatpush1.msra.mxu0 0.0
    %128 = vmatprep.subr.mxu0 0.0
    %129 = vmatpush1.msra.mxu0 0.0
    %130 = vmatprep.subr.mxu0 0.0
    %131 = vmatpush1.msra.mxu0 0.0
    %132 = vmatprep.subr.mxu0 0.0
    %133 = vmatpush1.msra.mxu0 0.0
    %134 = vmatprep.subr.mxu0 0.0
    %135 = vmatpush1.msra.mxu0 0.0
    %136 = vmatprep.subr.mxu0 0.0
    %137 = vmatpush1.msra.mxu0 0.0
    %138 = vmatprep.subr.mxu0 0.0
    %139 = vmatpush1.msra.mxu0 0.0
    %140 = vmatprep.subr.mxu0 0.0
    %141 = vmatpush1.msra.mxu0 0.0
    %142 = vmatprep.subr.mxu0 0.0
    %143 = vmatpush1.msra.mxu0 0.0
    %144 = vmatprep.subr.mxu0 0.0
    %145 = vmatpush1.msra.mxu0 0.0
    %146 = vmatprep.subr.mxu0 0.0
    %147 = vmatpush1.msra.mxu0 0.0
    %148 = vmatprep.subr.mxu0 0.0
    %149 = vmatpush1.msra.mxu0 0.0
    %150 = vmatprep.subr.mxu0 0.0
    %151 = vmatpush1.msra.mxu0 0.0
    %152 = vmatprep.mubr.f32.mxu0 0.0
    %153 = vmatmul.mubr.f32.gmra.mrb[0].mxu0 %v83
    %v154 = vpop.f32.mrb[0].mxu0
    %v155 = vadd.f32 %v79, %v154
    %v156 = vpop.f32.mrb[0].mxu0
    %157 = vmatprep.mubr.f32.mxu0 0.0
    %158 = vmatmul.mubr.f32.gmra.mrb[0].mxu0 %v86
    %v159 = vpop.f32.mrb[0].mxu0
    %v160 = vadd.f32 %v79, %v159
    %v161 = vpop.f32.mrb[0].mxu0
    %162 = vdwg.mxu0
    %v163 = vmax.f32 %v155, 0.0
    %v164 = vmax.f32 %v160, 0.0
    %v165 = vld [vmem:[#allocation8] sm:$0xff]
    %v166 = vld [vmem:[#allocation8 + $0x8] sm:$0xff]
    %v167 = vld [vmem:[#allocation8 + $0x10] sm:$0xff]
    %v168 = vld [vmem:[#allocation8 + $0x18] sm:$0xff]
    %v169 = vld [vmem:[#allocation8 + $0x20] sm:$0xff]
    %v170 = vld [vmem:[#allocation8 + $0x28] sm:$0xff]
    %v171 = vld [vmem:[#allocation8 + $0x30] sm:$0xff]
    %v172 = vld [vmem:[#allocation8 + $0x38] sm:$0xff]
    %v173 = vld [vmem:[#allocation8 + $0x40] sm:$0xff]
    %v174 = vld [vmem:[#allocation8 + $0x48] sm:$0xff]
    %v175 = vld [vmem:[#allocation8 + $0x50] sm:$0xff]
    %v176 = vld [vmem:[#allocation8 + $0x58] sm:$0xff]
    %v177 = vld [vmem:[#allocation8 + $0x60] sm:$0xff]
    %v178 = vld [vmem:[#allocation8 + $0x68] sm:$0xff]
    %v179 = vld [vmem:[#allocation8 + $0x70] sm:$0xff]
    %v180 = vld [vmem:[#allocation8 + $0x78] sm:$0xff]
    %v181 = vld [vmem:[%s4] sm:$0x1]
    %v183 = vlaneseq
    %v184 = vshrl.u32 %v183, 7
    %v185 = vsub.s32 0, %v184
    %v186 = vrot.slane %v181, %v185
    %188 = vmatprep.subr.mxu0 0.0
    %189 = vmatpush1.msra.mxu0 %v165
    %190 = vmatprep.subr.mxu0 0.0
    %191 = vmatpush1.msra.mxu0 %v166
    %192 = vmatprep.subr.mxu0 0.0
    %193 = vmatpush1.msra.mxu0 %v167
    %194 = vmatprep.subr.mxu0 0.0
    %195 = vmatpush1.msra.mxu0 %v168
    %196 = vmatprep.subr.mxu0 0.0
    %197 = vmatpush1.msra.mxu0 %v169
    %198 = vmatprep.subr.mxu0 0.0
    %199 = vmatpush1.msra.mxu0 %v170
    %200 = vmatprep.subr.mxu0 0.0
    %201 = vmatpush1.msra.mxu0 %v171
    %202 = vmatprep.subr.mxu0 0.0
    %203 = vmatpush1.msra.mxu0 %v172
    %204 = vmatprep.subr.mxu0 0.0
    %205 = vmatpush1.msra.mxu0 %v173
    %206 = vmatprep.subr.mxu0 0.0
    %207 = vmatpush1.msra.mxu0 %v174
    %208 = vmatprep.subr.mxu0 0.0
    %209 = vmatpush1.msra.mxu0 %v175
    %210 = vmatprep.subr.mxu0 0.0
    %211 = vmatpush1.msra.mxu0 %v176
    %212 = vmatprep.subr.mxu0 0.0
    %213 = vmatpush1.msra.mxu0 %v177
    %214 = vmatprep.subr.mxu0 0.0
    %215 = vmatpush1.msra.mxu0 %v178
    %216 = vmatprep.subr.mxu0 0.0
    %217 = vmatpush1.msra.mxu0 %v179
    %218 = vmatprep.subr.mxu0 0.0
    %219 = vmatpush1.msra.mxu0 %v180
    %220 = vmatprep.subr.mxu0 0.0
    %221 = vmatpush1.msra.mxu0 0.0
    %222 = vmatprep.subr.mxu0 0.0
    %223 = vmatpush1.msra.mxu0 0.0
    %224 = vmatprep.subr.mxu0 0.0
    %225 = vmatpush1.msra.mxu0 0.0
    %226 = vmatprep.subr.mxu0 0.0
    %227 = vmatpush1.msra.mxu0 0.0
    %228 = vmatprep.subr.mxu0 0.0
    %229 = vmatpush1.msra.mxu0 0.0
    %230 = vmatprep.subr.mxu0 0.0
    %231 = vmatpush1.msra.mxu0 0.0
    %232 = vmatprep.subr.mxu0 0.0
    %233 = vmatpush1.msra.mxu0 0.0
    %234 = vmatprep.subr.mxu0 0.0
    %235 = vmatpush1.msra.mxu0 0.0
    %236 = vmatprep.subr.mxu0 0.0
    %237 = vmatpush1.msra.mxu0 0.0
    %238 = vmatprep.subr.mxu0 0.0
    %239 = vmatpush1.msra.mxu0 0.0
    %240 = vmatprep.subr.mxu0 0.0
    %241 = vmatpush1.msra.mxu0 0.0
    %242 = vmatprep.subr.mxu0 0.0
    %243 = vmatpush1.msra.mxu0 0.0
    %244 = vmatprep.subr.mxu0 0.0
    %245 = vmatpush1.msra.mxu0 0.0
    %246 = vmatprep.subr.mxu0 0.0
    %247 = vmatpush1.msra.mxu0 0.0
    %248 = vmatprep.subr.mxu0 0.0
    %249 = vmatpush1.msra.mxu0 0.0
    %250 = vmatprep.subr.mxu0 0.0
    %251 = vmatpush1.msra.mxu0 0.0
    %252 = vmatprep.mubr.f32.mxu0 0.0
    %253 = vmatmul.mubr.f32.gmra.mrb[0].mxu0 %v163
    %v254 = vpop.f32.mrb[0].mxu0
    %v255 = vadd.f32 %v186, %v254
    %v256 = vpop.f32.mrb[0].mxu0
    %257 = vmatprep.mubr.f32.mxu0 0.0
    %258 = vmatmul.mubr.f32.gmra.mrb[0].mxu0 %v164
    %v259 = vpop.f32.mrb[0].mxu0
    %v260 = vadd.f32 %v186, %v259
    %v261 = vpop.f32.mrb[0].mxu0
    %262 = vdwg.mxu0
    %v263 = vmax.f32 %v255, 0.0
    %v264 = vmax.f32 %v260, 0.0
    %v265 = vld [vmem:[%s5] sm:$0x1]
    %v266 = vld [vmem:[#allocation2] sm:$0x1]
    %268 = vset.pattern.permute.xlu0 0
    %269 = vperm.xlu0 %268, %v266
    %v270 = vpop.permute.xlu0 %269
    %v272 = vlaneseq
    %v273 = vshrl.u32 %v272, 7
    %v274 = vsub.s32 0, %v273
    %v275 = vrot.slane %v270, %v274
    %276 = vmatprep.subr.mxu0 0.0
    %277 = vmatpush1.xpose.msra.mxu0 %v263
    %278 = vmatprep.subr.mxu0 0.0
    %279 = vmatpush1.xpose.msra.mxu0 %v264
    %280 = vmatprep.subr.mxu0 0.0
    %281 = vmatpush1.xpose.msra.mxu0 0.0
    %282 = vmatprep.subr.mxu0 0.0
    %283 = vmatpush1.xpose.msra.mxu0 0.0
    %284 = vmatprep.subr.mxu0 0.0
    %285 = vmatpush1.xpose.msra.mxu0 0.0
    %286 = vmatprep.subr.mxu0 0.0
    %287 = vmatpush1.xpose.msra.mxu0 0.0
    %288 = vmatprep.subr.mxu0 0.0
    %289 = vmatpush1.xpose.msra.mxu0 0.0
    %290 = vmatprep.subr.mxu0 0.0
    %291 = vmatpush1.xpose.msra.mxu0 0.0
    %292 = vmatprep.subr.mxu0 0.0
    %293 = vmatpush1.xpose.msra.mxu0 0.0
    %294 = vmatprep.subr.mxu0 0.0
    %295 = vmatpush1.xpose.msra.mxu0 0.0
    %296 = vmatprep.subr.mxu0 0.0
    %297 = vmatpush1.xpose.msra.mxu0 0.0
    %298 = vmatprep.subr.mxu0 0.0
    %299 = vmatpush1.xpose.msra.mxu0 0.0
    %300 = vmatprep.subr.mxu0 0.0
    %301 = vmatpush1.xpose.msra.mxu0 0.0
    %302 = vmatprep.subr.mxu0 0.0
    %303 = vmatpush1.xpose.msra.mxu0 0.0
    %304 = vmatprep.subr.mxu0 0.0
    %305 = vmatpush1.xpose.msra.mxu0 0.0
    %306 = vmatprep.subr.mxu0 0.0
    %307 = vmatpush1.xpose.msra.mxu0 0.0
    %308 = vmatprep.subr.mxu0 0.0
    %309 = vmatpush1.xpose.msra.mxu0 0.0
    %310 = vmatprep.subr.mxu0 0.0
    %311 = vmatpush1.xpose.msra.mxu0 0.0
    %312 = vmatprep.subr.mxu0 0.0
    %313 = vmatpush1.xpose.msra.mxu0 0.0
    %314 = vmatprep.subr.mxu0 0.0
    %315 = vmatpush1.xpose.msra.mxu0 0.0
    %316 = vmatprep.subr.mxu0 0.0
    %317 = vmatpush1.xpose.msra.mxu0 0.0
    %318 = vmatprep.subr.mxu0 0.0
    %319 = vmatpush1.xpose.msra.mxu0 0.0
    %320 = vmatprep.subr.mxu0 0.0
    %321 = vmatpush1.xpose.msra.mxu0 0.0
    %322 = vmatprep.subr.mxu0 0.0
    %323 = vmatpush1.xpose.msra.mxu0 0.0
    %324 = vmatprep.subr.mxu0 0.0
    %325 = vmatpush1.xpose.msra.mxu0 0.0
    %326 = vmatprep.subr.mxu0 0.0
    %327 = vmatpush1.xpose.msra.mxu0 0.0
    %328 = vmatprep.subr.mxu0 0.0
    %329 = vmatpush1.xpose.msra.mxu0 0.0
    %330 = vmatprep.subr.mxu0 0.0
    %331 = vmatpush1.xpose.msra.mxu0 0.0
    %332 = vmatprep.subr.mxu0 0.0
    %333 = vmatpush1.xpose.msra.mxu0 0.0
    %334 = vmatprep.subr.mxu0 0.0
    %335 = vmatpush1.xpose.msra.mxu0 0.0
    %336 = vmatprep.subr.mxu0 0.0
    %337 = vmatpush1.xpose.msra.mxu0 0.0
    %338 = vmatprep.subr.mxu0 0.0
    %339 = vmatpush1.xpose.msra.mxu0 0.0
    %340 = vmatprep.mubr.f32.mxu0 0.0
    %341 = vmatmul.mubr.f32.gmra.mrb[0].mxu0 %v265
    %v342 = vpop.f32.mrb[0].mxu0
    %v343 = vadd.f32 %v275, %v342
    %v344 = vpop.f32.mrb[0].mxu0
    %345 = vdwg.mxu0
    %vm346 = vcmask 122880
    %347 = vst.msk [vmem:[#allocation9] sm:$0x1] %vm346, %v343
    // Predicated region
    $region42: #{tpu_custom_call.1} parent=1 // pred_check
      _
    $region43: #{tpu_custom_call.1} parent=1 // pred_check_branch
      %349 = sbr.rel (0) target = $region45
    $region44: #{tpu_custom_call.1} parent=1 // pred_region
      %s351 = ssub.s32 16, 16
      %352 = vsyncadd [#allocation5], %s351
      %s354 = sshll.u32 [#allocation9], 4
      %s355 = int_to_ptr.vmem [resolvable:$true] %s354
      %357 = dma.vmem_to_hbm [thread:$0]  %s355, 16, %s7, [#allocation5]
    $region45: #{tpu_custom_call.1} parent=1 // pred_fallthru
      _
    // Predicated region
    $region46: #{tpu_custom_call.1} parent=1 // pred_check
      _
    $region47: #{tpu_custom_call.1} parent=1 // pred_check_branch
      %359 = sbr.rel (0) target = $region49
    $region48: #{tpu_custom_call.1} parent=1 // pred_region
      %360 = dma.done [#allocation5], 16
    $region49: #{tpu_custom_call.1} parent=1 // pred_fallthru
      _
    %361 = vsyncpa [#allocation4], 1
    %362 = vsyncpa [#allocation7], 1
    %363 = vsyncpa [#allocation5], 1

</llo_original>
